<compile_context>
chip_gen: v7x
topology: tpu7x:2x2x1
jax: 0.10.0
libtpu: 0.0.40
codegen_flags: <defaults>
</compile_context>

<pallas_src>
import math
import jax
import jax.numpy as jnp
from jax import lax
from jax.experimental import pallas as pl
from jax.experimental.pallas import tpu as pltpu


# ---------------------------------------------------------------------------
# Kernel
# ---------------------------------------------------------------------------
def _make_random_layer_kernel(n_inputs, scale):
    """Fused kernel: out = (x0@w0 * scale) * (x1@w1) * ... * (x{n-1}@w{n-1})."""

    def kernel(*refs):
        # refs = (x_0..x_{n-1}, w_0..w_{n-1}, out)
        out_ref = refs[-1]
        acc = jnp.dot(
            refs[0][...], refs[n_inputs][...],
            preferred_element_type=jnp.float32,
            precision=lax.Precision.HIGHEST,
        ) * scale
        for i in range(1, n_inputs):
            acc = acc * jnp.dot(
                refs[i][...], refs[n_inputs + i][...],
                preferred_element_type=jnp.float32,
                precision=lax.Precision.HIGHEST,
            )
        out_ref[...] = acc.astype(out_ref.dtype)

    return kernel


def _round_up(x, m):
    return ((x + m - 1) // m) * m


# ---------------------------------------------------------------------------
# Wrapper
# ---------------------------------------------------------------------------
def random_layer_forward(input_list, random_matrices, output_dim, *,
                         tm_max=512, tn_max=512):
    """input_list[i]: (B, D_i) f32, random_matrices[i]: (D_i, output_dim) f32
       -> (B, output_dim) f32, matching RandomLayer.forward semantics."""
    n = len(input_list)
    assert n == len(random_matrices) and n >= 1
    B = input_list[0].shape[0]
    F = output_dim
    for x, w in zip(input_list, random_matrices):
        assert x.shape[0] == B and w.shape == (x.shape[1], F)

    # Batch (sublane) tiling: pad to a sublane-aligned tile.
    tm = min(tm_max, _round_up(B, 8))
    b_pad = _round_up(B, tm)

    # Column (lane) tiling: pad F to a multiple of 128 so stores are lane-dense,
    # then pick the largest tile in {512, 256, 128} that divides the padded width.
    f_pad = _round_up(F, 128)
    tn = 128
    for cand in (512, 256, 128):
        if cand <= tn_max and f_pad % cand == 0:
            tn = cand
            break

    xs = []
    for x in input_list:
        x = x.astype(jnp.float32)
        if b_pad != B:
            x = jnp.pad(x, ((0, b_pad - B), (0, 0)))
        xs.append(x)
    ws = []
    for w in random_matrices:
        w = w.astype(jnp.float32)
        if f_pad != F:
            w = jnp.pad(w, ((0, 0), (0, f_pad - F)))
        ws.append(w)

    grid = (b_pad // tm, f_pad // tn)
    scale = 1.0 / math.pow(float(F), 1.0 / n)
    kernel = _make_random_layer_kernel(n, scale)

    in_specs = (
        # Activations: fixed along the column axis -> stay VMEM-resident across the
        # inner (column) grid loop, only the small (D_i, tn) weight tiles stream.
        [pl.BlockSpec((tm, x.shape[1]), lambda r, c: (r, 0)) for x in xs]
        + [pl.BlockSpec((w.shape[0], tn), lambda r, c: (0, c)) for w in ws]
    )

    out = pl.pallas_call(
        kernel,
        out_shape=jax.ShapeDtypeStruct((b_pad, f_pad), jnp.float32),
        grid=grid,
        in_specs=in_specs,
        out_specs=pl.BlockSpec((tm, tn), lambda r, c: (r, c)),
        compiler_params=pltpu.CompilerParams(
            dimension_semantics=("parallel", "parallel")),
    )(*xs, *ws)

    if b_pad != B or f_pad != F:
        out = out[:B, :F]
    return out


# ---------------------------------------------------------------------------
# Pure-JAX reference (mirrors the PyTorch module exactly)
# ---------------------------------------------------------------------------
def random_layer_reference(input_list, random_matrices, output_dim):
    n = len(input_list)
    rets = [
        jnp.matmul(x.astype(jnp.float32), w.astype(jnp.float32),
                   precision=lax.Precision.HIGHEST)
        for x, w in zip(input_list, random_matrices)
    ]
    out = rets[0] / math.pow(float(output_dim), 1.0 / n)
    for r in rets[1:]:
        out = out * r
    return out


# ---------------------------------------------------------------------------
if __name__ == "__main__":
    key = jax.random.PRNGKey(0)

    # Two input streams (e.g. features and logits), batch=8, dims [32, 16];
    # output_dim a multiple of 128 so no padding path is exercised by default.
    B = 8
    input_dim_list = [32, 16]
    output_dim = 256

    keys = jax.random.split(key, 2 * len(input_dim_list))
    input_list = [
        jax.random.normal(keys[i], (B, d), jnp.float32)
        for i, d in enumerate(input_dim_list)
    ]
    random_matrices = [
        jax.random.normal(keys[len(input_dim_list) + i], (d, output_dim), jnp.float32)
        for i, d in enumerate(input_dim_list)
    ]

    out = jax.block_until_ready(
        random_layer_forward(input_list, random_matrices, output_dim))
    ref = jax.block_until_ready(
        random_layer_reference(input_list, random_matrices, output_dim))

    assert out.shape == (B, output_dim), (out.shape, (B, output_dim))
    err = float(jnp.max(jnp.abs(out - ref)))
    assert err < 5e-2, err

    print("KERNEL_OK")
</pallas_src>

<mosaic_0001>
module attributes {stable_mosaic.version = 11 : i64} {
  func.func @kernel(%arg0: i32, %arg1: i32, %arg2: memref<8x32xf32, #tpu.memory_space<vmem>>, %arg3: memref<8x16xf32, #tpu.memory_space<vmem>>, %arg4: memref<32x256xf32, #tpu.memory_space<vmem>>, %arg5: memref<16x256xf32, #tpu.memory_space<vmem>>, %arg6: memref<8x256xf32, #tpu.memory_space<vmem>>) attributes {dimension_semantics = [#tpu.dimension_semantics<parallel>, #tpu.dimension_semantics<parallel>], iteration_bounds = array<i64: 1, 1>, scalar_prefetch = 0 : i64, scratch_operands = 0 : i64, tpu.core_type = #tpu.core_type<tc>, window_params = [{transform_indices = @transform_0, window_bounds = array<i64: 8, 32>}, {transform_indices = @transform_1, window_bounds = array<i64: 8, 16>}, {transform_indices = @transform_2, window_bounds = array<i64: 32, 256>}, {transform_indices = @transform_3, window_bounds = array<i64: 16, 256>}, {transform_indices = @transform_4, window_bounds = array<i64: 8, 256>}]} {
    %c0 = arith.constant 0 : index
    %c0_0 = arith.constant 0 : index
    %0 = vector.load %arg2[%c0, %c0_0] : memref<8x32xf32, #tpu.memory_space<vmem>>, vector<8x32xf32>
    %c0_1 = arith.constant 0 : index
    %c0_2 = arith.constant 0 : index
    %1 = vector.load %arg4[%c0_1, %c0_2] : memref<32x256xf32, #tpu.memory_space<vmem>>, vector<32x256xf32>
    %cst = arith.constant dense<0.000000e+00> : vector<8x256xf32>
    %2 = tpu.matmul %0, %1, %cst {dimension_numbers = #tpu.dot_dimension_numbers<[1], [0], [0], [1], [0, 0, 1, 1], [], []>, precision = #tpu.contract_precision<fp32>} : vector<8x32xf32>, vector<32x256xf32>, vector<8x256xf32> -> vector<8x256xf32>
    %cst_3 = arith.constant 6.250000e-02 : f32
    %3 = vector.broadcast %cst_3 : f32 to vector<8x256xf32>
    %4 = arith.mulf %2, %3 : vector<8x256xf32>
    %c0_4 = arith.constant 0 : index
    %c0_5 = arith.constant 0 : index
    %5 = vector.load %arg3[%c0_4, %c0_5] : memref<8x16xf32, #tpu.memory_space<vmem>>, vector<8x16xf32>
    %c0_6 = arith.constant 0 : index
    %c0_7 = arith.constant 0 : index
    %6 = vector.load %arg5[%c0_6, %c0_7] : memref<16x256xf32, #tpu.memory_space<vmem>>, vector<16x256xf32>
    %cst_8 = arith.constant dense<0.000000e+00> : vector<8x256xf32>
    %7 = tpu.matmul %5, %6, %cst_8 {dimension_numbers = #tpu.dot_dimension_numbers<[1], [0], [0], [1], [0, 0, 1, 1], [], []>, precision = #tpu.contract_precision<fp32>} : vector<8x16xf32>, vector<16x256xf32>, vector<8x256xf32> -> vector<8x256xf32>
    %8 = arith.mulf %4, %7 : vector<8x256xf32>
    %c0_9 = arith.constant 0 : index
    %c0_10 = arith.constant 0 : index
    %9 = vector.load %arg6[%c0_9, %c0_10] : memref<8x256xf32, #tpu.memory_space<vmem>>, vector<8x256xf32>
    tpu.vector_store %arg6[%c0_9, %c0_10], %8 {strides = array<i32>} : memref<8x256xf32, #tpu.memory_space<vmem>>, vector<8x256xf32>,
    return
  }
  func.func @transform_0(%arg0: i32, %arg1: i32) -> (i32, i32) {
    %c0_i32 = arith.constant 0 : i32
    %c0_i32_0 = arith.constant 0 : i32
    return %arg0, %c0_i32 : i32, i32
  }
  func.func @transform_1(%arg0: i32, %arg1: i32) -> (i32, i32) {
    %c0_i32 = arith.constant 0 : i32
    %c0_i32_0 = arith.constant 0 : i32
    return %arg0, %c0_i32 : i32, i32
  }
  func.func @transform_2(%arg0: i32, %arg1: i32) -> (i32, i32) {
    %c0_i32 = arith.constant 0 : i32
    %c0_i32_0 = arith.constant 0 : i32
    return %c0_i32, %arg1 : i32, i32
  }
  func.func @transform_3(%arg0: i32, %arg1: i32) -> (i32, i32) {
    %c0_i32 = arith.constant 0 : i32
    %c0_i32_0 = arith.constant 0 : i32
    return %c0_i32, %arg1 : i32, i32
  }
  func.func @transform_4(%arg0: i32, %arg1: i32) -> (i32, i32) {
    %c0_i32 = arith.constant 0 : i32
    return %arg0, %arg1 : i32, i32
  }
}

</mosaic_0001>

<llo_original>
// kernel: tpu_custom_call.1
$region0: #{tpu_custom_call.1}
  #allocation0 [shape = 'u32[]', space=smem, size = 0x4, offset = 0x4, fixed_abs, tag = 'smem constant byte address 0x4 - core index']
  #allocation1 [shape = 'u32[144,128]{1,0:T(1,128)}', space=vmem, size = 0x12000, scoped, tag = 'internal scratch']
  %s0 = inlined_call_operand.hbm [shape: f32[8,32], index: 0, kind: input, shape index: {}]
  %s1 = inlined_call_operand.hbm [shape: f32[8,16], index: 1, kind: input, shape index: {}]
  %s2 = inlined_call_operand.hbm [shape: f32[32,256], index: 2, kind: input, shape index: {}]
  %s3 = inlined_call_operand.hbm [shape: f32[16,256], index: 3, kind: input, shape index: {}]
  %s4 = inlined_call_operand.hbm [shape: f32[8,256], index: 4, kind: output, shape index: {}]
  %s5 = sld [smem:[#allocation0]]
  $region42: #{tpu_custom_call.1} parent=0
    _
  %s7 = ssub.s32 1, %s5
  %s8 = scalar_select 0, %s7, %s5
  $region1: #{tpu_custom_call.1} parent=0
    #allocation2 [shape = 'u8[4096]{0}', space=vmem, size = 0x1000, scoped, tag = 'input window, operand 0, single buffered']
    #allocation3 [shape = 's32[1]{0}', space=sflag, size = 0x4, scoped, tag = 'scoped memory for tpu_custom_call.1']
    #allocation4 [shape = 's32[1]{0}', space=sflag, size = 0x4, scoped, tag = 'scoped memory for tpu_custom_call.1']
    #allocation5 [shape = 'u8[4096]{0}', space=vmem, size = 0x1000, scoped, tag = 'input window, operand 1, single buffered']
    #allocation6 [shape = 's32[1]{0}', space=sflag, size = 0x4, scoped, tag = 'scoped memory for tpu_custom_call.1']
    #allocation7 [shape = 'u8[32768]{0}', space=vmem, size = 0x8000, scoped, tag = 'input window, operand 2, single buffered']
    #allocation8 [shape = 'u8[16384]{0}', space=vmem, size = 0x4000, scoped, tag = 'input window, operand 3, single buffered']
    #allocation9 [shape = 's32[1]{0}', space=sflag, size = 0x4, scoped, tag = 'scoped memory for tpu_custom_call.1']
    #allocation10 [shape = 'u8[8192]{0}', space=vmem, size = 0x2000, scoped, tag = 'output window, operand 0, single buffered']
    %9 = vsyncpa [#allocation3], 0
    %10 = vsyncpa [#allocation6], 0
    %11 = vsyncpa [#allocation9], 0
    %12 = vsyncpa [#allocation4], 0
    // Predicated region
    $region2: #{tpu_custom_call.1} parent=1 // pred_check
      _
    $region3: #{tpu_custom_call.1} parent=1 // pred_check_branch
      %14 = sbr.rel (0) target = $region5
    $region4: #{tpu_custom_call.1} parent=1 // pred_region
      %s16 = ssub.s32 128, 128
      %17 = vsyncadd [#allocation3], %s16
      %s19 = sshll.u32 [#allocation2], 4
      %s20 = int_to_ptr.vmem [resolvable:$true] %s19
      %22 = dma.hbm_to_vmem [thread:$0]  %s0, 128, %s20, [#allocation3]
    $region5: #{tpu_custom_call.1} parent=1 // pred_fallthru
      _
    // Predicated region
    $region6: #{tpu_custom_call.1} parent=1 // pred_check
      _
    $region7: #{tpu_custom_call.1} parent=1 // pred_check_branch
      %24 = sbr.rel (0) target = $region9
    $region8: #{tpu_custom_call.1} parent=1 // pred_region
      %s26 = ssub.s32 128, 128
      %27 = vsyncadd [#allocation6], %s26
      %s29 = sshll.u32 [#allocation5], 4
      %s30 = int_to_ptr.vmem [resolvable:$true] %s29
      %32 = dma.hbm_to_vmem [thread:$0]  %s1, 128, %s30, [#allocation6]
    $region9: #{tpu_custom_call.1} parent=1 // pred_fallthru
      _
    // Predicated region
    $region10: #{tpu_custom_call.1} parent=1 // pred_check
      _
    $region11: #{tpu_custom_call.1} parent=1 // pred_check_branch
      %34 = sbr.rel (0) target = $region13
    $region12: #{tpu_custom_call.1} parent=1 // pred_region
      %s36 = ssub.s32 1024, 1024
      %37 = vsyncadd [#allocation6], %s36
      %s38 = sshll.u32 [#allocation7], 4
      %s39 = int_to_ptr.vmem [resolvable:$true] %s38
      %44 = dma.hbm_to_vmem [thread:$0]  %s2, 1024, %s39, [#allocation6], 256, 256, 16
    $region13: #{tpu_custom_call.1} parent=1 // pred_fallthru
      _
    // Predicated region
    $region14: #{tpu_custom_call.1} parent=1 // pred_check
      _
    $region15: #{tpu_custom_call.1} parent=1 // pred_check_branch
      %46 = sbr.rel (0) target = $region17
    $region16: #{tpu_custom_call.1} parent=1 // pred_region
      %s48 = ssub.s32 512, 512
      %49 = vsyncadd [#allocation9], %s48
      %s50 = sshll.u32 [#allocation8], 4
      %s51 = int_to_ptr.vmem [resolvable:$true] %s50
      %56 = dma.hbm_to_vmem [thread:$0]  %s3, 512, %s51, [#allocation9], 256, 256, 16
    $region17: #{tpu_custom_call.1} parent=1 // pred_fallthru
      _
    // Predicated region
    $region18: #{tpu_custom_call.1} parent=1 // pred_check
      _
    $region19: #{tpu_custom_call.1} parent=1 // pred_check_branch
      %58 = sbr.rel (0) target = $region21
    $region20: #{tpu_custom_call.1} parent=1 // pred_region
      %59 = dma.done [#allocation3], 128
    $region21: #{tpu_custom_call.1} parent=1 // pred_fallthru
      _
    // Predicated region
    $region22: #{tpu_custom_call.1} parent=1 // pred_check
      _
    $region23: #{tpu_custom_call.1} parent=1 // pred_check_branch
      %61 = sbr.rel (0) target = $region25
    $region24: #{tpu_custom_call.1} parent=1 // pred_region
      %62 = dma.done [#allocation6], 128
    $region25: #{tpu_custom_call.1} parent=1 // pred_fallthru
      _
    // Predicated region
    $region26: #{tpu_custom_call.1} parent=1 // pred_check
      _
    $region27: #{tpu_custom_call.1} parent=1 // pred_check_branch
      %64 = sbr.rel (0) target = $region29
    $region28: #{tpu_custom_call.1} parent=1 // pred_region
      %65 = dma.done [#allocation6], 1024
    $region29: #{tpu_custom_call.1} parent=1 // pred_fallthru
      _
    // Predicated region
    $region30: #{tpu_custom_call.1} parent=1 // pred_check
      _
    $region31: #{tpu_custom_call.1} parent=1 // pred_check_branch
      %67 = sbr.rel (0) target = $region33
    $region32: #{tpu_custom_call.1} parent=1 // pred_region
      %68 = dma.done [#allocation9], 512
    $region33: #{tpu_custom_call.1} parent=1 // pred_fallthru
      _
    %v69 = vld [vmem:[#allocation2] sm:$0xff]
    %v70 = vld [vmem:[#allocation7] sm:$0xff]
    %v71 = vld [vmem:[#allocation7 + $0x8] sm:$0xff]
    %v72 = vld [vmem:[#allocation7 + $0x10] sm:$0xff]
    %v73 = vld [vmem:[#allocation7 + $0x18] sm:$0xff]
    %v74 = vld [vmem:[#allocation7 + $0x20] sm:$0xff]
    %v75 = vld [vmem:[#allocation7 + $0x28] sm:$0xff]
    %v76 = vld [vmem:[#allocation7 + $0x30] sm:$0xff]
    %v77 = vld [vmem:[#allocation7 + $0x38] sm:$0xff]
    %vm78 = vcmask 261120
    %v80 = vsel %vm78, %v69, 0
    %v82 = vand.u32 %v71, 4294901760
    %83 = vmatprep.subr.mxu0 %v82
    %v84 = vand.u32 %v70, 4294901760
    %85 = vmatpush1.msra.mxu0 %v84
    %v86 = vand.u32 %v73, 4294901760
    %87 = vmatprep.subr.mxu0 %v86
    %v88 = vand.u32 %v72, 4294901760
    %89 = vmatpush1.msra.mxu0 %v88
    %v90 = vand.u32 %v75, 4294901760
    %91 = vmatprep.subr.mxu0 %v90
    %v92 = vand.u32 %v74, 4294901760
    %93 = vmatpush1.msra.mxu0 %v92
    %v94 = vand.u32 %v77, 4294901760
    %95 = vmatprep.subr.mxu0 %v94
    %v96 = vand.u32 %v76, 4294901760
    %97 = vmatpush1.msra.mxu0 %v96
    %98 = vmatprep.subr.mxu0 0.0
    %99 = vmatpush1.msra.mxu0 0.0
    %100 = vmatprep.subr.mxu0 0.0
    %101 = vmatpush1.msra.mxu0 0.0
    %102 = vmatprep.subr.mxu0 0.0
    %103 = vmatpush1.msra.mxu0 0.0
    %104 = vmatprep.subr.mxu0 0.0
    %105 = vmatpush1.msra.mxu0 0.0
    %106 = vmatprep.subr.mxu0 0.0
    %107 = vmatpush1.msra.mxu0 0.0
    %108 = vmatprep.subr.mxu0 0.0
    %109 = vmatpush1.msra.mxu0 0.0
    %110 = vmatprep.subr.mxu0 0.0
    %111 = vmatpush1.msra.mxu0 0.0
    %112 = vmatprep.subr.mxu0 0.0
    %113 = vmatpush1.msra.mxu0 0.0
    %114 = vmatprep.subr.mxu0 0.0
    %115 = vmatpush1.msra.mxu0 0.0
    %116 = vmatprep.subr.mxu0 0.0
    %117 = vmatpush1.msra.mxu0 0.0
    %118 = vmatprep.subr.mxu0 0.0
    %119 = vmatpush1.msra.mxu0 0.0
    %120 = vmatprep.subr.mxu0 0.0
    %121 = vmatpush1.msra.mxu0 0.0
    %122 = vmatprep.subr.mxu0 0.0
    %123 = vmatpush1.msra.mxu0 0.0
    %124 = vmatprep.subr.mxu0 0.0
    %125 = vmatpush1.msra.mxu0 0.0
    %126 = vmatprep.subr.mxu0 0.0
    %127 = vmatpush1.msra.mxu0 0.0
    %128 = vmatprep.subr.mxu0 0.0
    %129 = vmatpush1.msra.mxu0 0.0
    %130 = vmatprep.subr.mxu0 0.0
    %131 = vmatpush1.msra.mxu0 0.0
    %132 = vmatprep.subr.mxu0 0.0
    %133 = vmatpush1.msra.mxu0 0.0
    %134 = vmatprep.subr.mxu0 0.0
    %135 = vmatpush1.msra.mxu0 0.0
    %136 = vmatprep.subr.mxu0 0.0
    %137 = vmatpush1.msra.mxu0 0.0
    %138 = vmatprep.subr.mxu0 0.0
    %139 = vmatpush1.msra.mxu0 0.0
    %140 = vmatprep.subr.mxu0 0.0
    %141 = vmatpush1.msra.mxu0 0.0
    %142 = vmatprep.subr.mxu0 0.0
    %143 = vmatpush1.msra.mxu0 0.0
    %144 = vmatprep.subr.mxu0 0.0
    %145 = vmatpush1.msra.mxu0 0.0
    %146 = vmatprep.subr.mxu0 0.0
    %147 = vmatpush1.msra.mxu0 0.0
    %148 = vmatprep.subr.mxu0 0.0
    %149 = vmatpush1.msra.mxu0 0.0
    %150 = vmatprep.subr.mxu0 0.0
    %151 = vmatpush1.msra.mxu0 0.0
    %152 = vmatprep.subr.mxu0 0.0
    %153 = vmatpush1.msra.mxu0 0.0
    %154 = vmatprep.mubr.f32.mxu0 0.0
    %v155 = vand.u32 %v80, 4294901760
    %v156 = vsub.f32 %v80, %v155
    %v157 = vand.u32 %v156, 4294901760
    %v158 = vsub.f32 %v156, %v157
    %v159 = vand.u32 %v158, 4294901760
    %160 = vmatmul.mubr.f32.gmra.mrb[0].mxu0 %v159
    %v161 = vpop.f32.mrb[0].mxu0
    %v162 = vadd.f32 0.0, %v161
    %v163 = vpop.f32.mrb[0].mxu0
    %v164 = vadd.f32 0.0, %v163
    %165 = vdwg.mxu0
    %v166 = vand.u32 %v71, 4294901760
    %v167 = vsub.f32 %v71, %v166
    %v168 = vand.u32 %v167, 4294901760
    %v169 = vsub.f32 %v167, %v168
    %v170 = vand.u32 %v169, 4294901760
    %171 = vmatprep.subr.mxu0 %v170
    %v172 = vand.u32 %v70, 4294901760
    %v173 = vsub.f32 %v70, %v172
    %v174 = vand.u32 %v173, 4294901760
    %v175 = vsub.f32 %v173, %v174
    %v176 = vand.u32 %v175, 4294901760
    %177 = vmatpush1.msra.mxu0 %v176
    %v178 = vand.u32 %v73, 4294901760
    %v179 = vsub.f32 %v73, %v178
    %v180 = vand.u32 %v179, 4294901760
    %v181 = vsub.f32 %v179, %v180
    %v182 = vand.u32 %v181, 4294901760
    %183 = vmatprep.subr.mxu0 %v182
    %v184 = vand.u32 %v72, 4294901760
    %v185 = vsub.f32 %v72, %v184
    %v186 = vand.u32 %v185, 4294901760
    %v187 = vsub.f32 %v185, %v186
    %v188 = vand.u32 %v187, 4294901760
    %189 = vmatpush1.msra.mxu0 %v188
    %v190 = vand.u32 %v75, 4294901760
    %v191 = vsub.f32 %v75, %v190
    %v192 = vand.u32 %v191, 4294901760
    %v193 = vsub.f32 %v191, %v192
    %v194 = vand.u32 %v193, 4294901760
    %195 = vmatprep.subr.mxu0 %v194
    %v196 = vand.u32 %v74, 4294901760
    %v197 = vsub.f32 %v74, %v196
    %v198 = vand.u32 %v197, 4294901760
    %v199 = vsub.f32 %v197, %v198
    %v200 = vand.u32 %v199, 4294901760
    %201 = vmatpush1.msra.mxu0 %v200
    %v202 = vand.u32 %v77, 4294901760
    %v203 = vsub.f32 %v77, %v202
    %v204 = vand.u32 %v203, 4294901760
    %v205 = vsub.f32 %v203, %v204
    %v206 = vand.u32 %v205, 4294901760
    %207 = vmatprep.subr.mxu0 %v206
    %v208 = vand.u32 %v76, 4294901760
    %v209 = vsub.f32 %v76, %v208
    %v210 = vand.u32 %v209, 4294901760
    %v211 = vsub.f32 %v209, %v210
    %v212 = vand.u32 %v211, 4294901760
    %213 = vmatpush1.msra.mxu0 %v212
    %214 = vmatprep.subr.mxu0 0.0
    %215 = vmatpush1.msra.mxu0 0.0
    %216 = vmatprep.subr.mxu0 0.0
    %217 = vmatpush1.msra.mxu0 0.0
    %218 = vmatprep.subr.mxu0 0.0
    %219 = vmatpush1.msra.mxu0 0.0
    %220 = vmatprep.subr.mxu0 0.0
    %221 = vmatpush1.msra.mxu0 0.0
    %222 = vmatprep.subr.mxu0 0.0
    %223 = vmatpush1.msra.mxu0 0.0
    %224 = vmatprep.subr.mxu0 0.0
    %225 = vmatpush1.msra.mxu0 0.0
    %226 = vmatprep.subr.mxu0 0.0
    %227 = vmatpush1.msra.mxu0 0.0
    %228 = vmatprep.subr.mxu0 0.0
    %229 = vmatpush1.msra.mxu0 0.0
    %230 = vmatprep.subr.mxu0 0.0
    %231 = vmatpush1.msra.mxu0 0.0
    %232 = vmatprep.subr.mxu0 0.0
    %233 = vmatpush1.msra.mxu0 0.0
    %234 = vmatprep.subr.mxu0 0.0
    %235 = vmatpush1.msra.mxu0 0.0
    %236 = vmatprep.subr.mxu0 0.0
    %237 = vmatpush1.msra.mxu0 0.0
    %238 = vmatprep.subr.mxu0 0.0
    %239 = vmatpush1.msra.mxu0 0.0
    %240 = vmatprep.subr.mxu0 0.0
    %241 = vmatpush1.msra.mxu0 0.0
    %242 = vmatprep.subr.mxu0 0.0
    %243 = vmatpush1.msra.mxu0 0.0
    %244 = vmatprep.subr.mxu0 0.0
    %245 = vmatpush1.msra.mxu0 0.0
    %246 = vmatprep.subr.mxu0 0.0
    %247 = vmatpush1.msra.mxu0 0.0
    %248 = vmatprep.subr.mxu0 0.0
    %249 = vmatpush1.msra.mxu0 0.0
    %250 = vmatprep.subr.mxu0 0.0
    %251 = vmatpush1.msra.mxu0 0.0
    %252 = vmatprep.subr.mxu0 0.0
    %253 = vmatpush1.msra.mxu0 0.0
    %254 = vmatprep.subr.mxu0 0.0
    %255 = vmatpush1.msra.mxu0 0.0
    %256 = vmatprep.subr.mxu0 0.0
    %257 = vmatpush1.msra.mxu0 0.0
    %258 = vmatprep.subr.mxu0 0.0
    %259 = vmatpush1.msra.mxu0 0.0
    %260 = vmatprep.subr.mxu0 0.0
    %261 = vmatpush1.msra.mxu0 0.0
    %262 = vmatprep.subr.mxu0 0.0
    %263 = vmatpush1.msra.mxu0 0.0
    %264 = vmatprep.subr.mxu0 0.0
    %265 = vmatpush1.msra.mxu0 0.0
    %266 = vmatprep.subr.mxu0 0.0
    %267 = vmatpush1.msra.mxu0 0.0
    %268 = vmatprep.subr.mxu0 0.0
    %269 = vmatpush1.msra.mxu0 0.0
    %270 = vmatprep.mubr.f32.mxu0 0.0
    %v271 = vand.u32 %v80, 4294901760
    %272 = vmatmul.mubr.f32.gmra.mrb[0].mxu0 %v271
    %v273 = vpop.f32.mrb[0].mxu0
    %v274 = vadd.f32 %v162, %v273
    %v275 = vpop.f32.mrb[0].mxu0
    %v276 = vadd.f32 %v164, %v275
    %277 = vdwg.mxu0
    %v278 = vand.u32 %v71, 4294901760
    %v279 = vsub.f32 %v71, %v278
    %280 = vmatprep.subr.mxu0 %v279
    %v281 = vand.u32 %v70, 4294901760
    %v282 = vsub.f32 %v70, %v281
    %283 = vmatpush1.msra.mxu0 %v282
    %v284 = vand.u32 %v73, 4294901760
    %v285 = vsub.f32 %v73, %v284
    %286 = vmatprep.subr.mxu0 %v285
    %v287 = vand.u32 %v72, 4294901760
    %v288 = vsub.f32 %v72, %v287
    %289 = vmatpush1.msra.mxu0 %v288
    %v290 = vand.u32 %v75, 4294901760
    %v291 = vsub.f32 %v75, %v290
    %292 = vmatprep.subr.mxu0 %v291
    %v293 = vand.u32 %v74, 4294901760
    %v294 = vsub.f32 %v74, %v293
    %295 = vmatpush1.msra.mxu0 %v294
    %v296 = vand.u32 %v77, 4294901760
    %v297 = vsub.f32 %v77, %v296
    %298 = vmatprep.subr.mxu0 %v297
    %v299 = vand.u32 %v76, 4294901760
    %v300 = vsub.f32 %v76, %v299
    %301 = vmatpush1.msra.mxu0 %v300
    %302 = vmatprep.subr.mxu0 0.0
    %303 = vmatpush1.msra.mxu0 0.0
    %304 = vmatprep.subr.mxu0 0.0
    %305 = vmatpush1.msra.mxu0 0.0
    %306 = vmatprep.subr.mxu0 0.0
    %307 = vmatpush1.msra.mxu0 0.0
    %308 = vmatprep.subr.mxu0 0.0
    %309 = vmatpush1.msra.mxu0 0.0
    %310 = vmatprep.subr.mxu0 0.0
    %311 = vmatpush1.msra.mxu0 0.0
    %312 = vmatprep.subr.mxu0 0.0
    %313 = vmatpush1.msra.mxu0 0.0
    %314 = vmatprep.subr.mxu0 0.0
    %315 = vmatpush1.msra.mxu0 0.0
    %316 = vmatprep.subr.mxu0 0.0
    %317 = vmatpush1.msra.mxu0 0.0
    %318 = vmatprep.subr.mxu0 0.0
    %319 = vmatpush1.msra.mxu0 0.0
    %320 = vmatprep.subr.mxu0 0.0
    %321 = vmatpush1.msra.mxu0 0.0
    %322 = vmatprep.subr.mxu0 0.0
    %323 = vmatpush1.msra.mxu0 0.0
    %324 = vmatprep.subr.mxu0 0.0
    %325 = vmatpush1.msra.mxu0 0.0
    %326 = vmatprep.subr.mxu0 0.0
    %327 = vmatpush1.msra.mxu0 0.0
    %328 = vmatprep.subr.mxu0 0.0
    %329 = vmatpush1.msra.mxu0 0.0
    %330 = vmatprep.subr.mxu0 0.0
    %331 = vmatpush1.msra.mxu0 0.0
    %332 = vmatprep.subr.mxu0 0.0
    %333 = vmatpush1.msra.mxu0 0.0
    %334 = vmatprep.subr.mxu0 0.0
    %335 = vmatpush1.msra.mxu0 0.0
    %336 = vmatprep.subr.mxu0 0.0
    %337 = vmatpush1.msra.mxu0 0.0
    %338 = vmatprep.subr.mxu0 0.0
    %339 = vmatpush1.msra.mxu0 0.0
    %340 = vmatprep.subr.mxu0 0.0
    %341 = vmatpush1.msra.mxu0 0.0
    %342 = vmatprep.subr.mxu0 0.0
    %343 = vmatpush1.msra.mxu0 0.0
    %344 = vmatprep.subr.mxu0 0.0
    %345 = vmatpush1.msra.mxu0 0.0
    %346 = vmatprep.subr.mxu0 0.0
    %347 = vmatpush1.msra.mxu0 0.0
    %348 = vmatprep.subr.mxu0 0.0
    %349 = vmatpush1.msra.mxu0 0.0
    %350 = vmatprep.subr.mxu0 0.0
    %351 = vmatpush1.msra.mxu0 0.0
    %352 = vmatprep.subr.mxu0 0.0
    %353 = vmatpush1.msra.mxu0 0.0
    %354 = vmatprep.subr.mxu0 0.0
    %355 = vmatpush1.msra.mxu0 0.0
    %356 = vmatprep.subr.mxu0 0.0
    %357 = vmatpush1.msra.mxu0 0.0
    %358 = vmatprep.mubr.f32.mxu0 0.0
    %v359 = vand.u32 %v80, 4294901760
    %v360 = vsub.f32 %v80, %v359
    %361 = vmatmul.mubr.f32.gmra.mrb[0].mxu0 %v360
    %v362 = vpop.f32.mrb[0].mxu0
    %v363 = vadd.f32 %v274, %v362
    %v364 = vpop.f32.mrb[0].mxu0
    %v365 = vadd.f32 %v276, %v364
    %366 = vdwg.mxu0
    %v367 = vand.u32 %v71, 4294901760
    %368 = vmatprep.subr.mxu0 %v367
    %v369 = vand.u32 %v70, 4294901760
    %370 = vmatpush1.msra.mxu0 %v369
    %v371 = vand.u32 %v73, 4294901760
    %372 = vmatprep.subr.mxu0 %v371
    %v373 = vand.u32 %v72, 4294901760
    %374 = vmatpush1.msra.mxu0 %v373
    %v375 = vand.u32 %v75, 4294901760
    %376 = vmatprep.subr.mxu0 %v375
    %v377 = vand.u32 %v74, 4294901760
    %378 = vmatpush1.msra.mxu0 %v377
    %v379 = vand.u32 %v77, 4294901760
    %380 = vmatprep.subr.mxu0 %v379
    %v381 = vand.u32 %v76, 4294901760
    %382 = vmatpush1.msra.mxu0 %v381
    %383 = vmatprep.subr.mxu0 0.0
    %384 = vmatpush1.msra.mxu0 0.0
    %385 = vmatprep.subr.mxu0 0.0
    %386 = vmatpush1.msra.mxu0 0.0
    %387 = vmatprep.subr.mxu0 0.0
    %388 = vmatpush1.msra.mxu0 0.0
    %389 = vmatprep.subr.mxu0 0.0
    %390 = vmatpush1.msra.mxu0 0.0
    %391 = vmatprep.subr.mxu0 0.0
    %392 = vmatpush1.msra.mxu0 0.0
    %393 = vmatprep.subr.mxu0 0.0
    %394 = vmatpush1.msra.mxu0 0.0
    %395 = vmatprep.subr.mxu0 0.0
    %396 = vmatpush1.msra.mxu0 0.0
    %397 = vmatprep.subr.mxu0 0.0
    %398 = vmatpush1.msra.mxu0 0.0
    %399 = vmatprep.subr.mxu0 0.0
    %400 = vmatpush1.msra.mxu0 0.0
    %401 = vmatprep.subr.mxu0 0.0
    %402 = vmatpush1.msra.mxu0 0.0
    %403 = vmatprep.subr.mxu0 0.0
    %404 = vmatpush1.msra.mxu0 0.0
    %405 = vmatprep.subr.mxu0 0.0
    %406 = vmatpush1.msra.mxu0 0.0
    %407 = vmatprep.subr.mxu0 0.0
    %408 = vmatpush1.msra.mxu0 0.0
    %409 = vmatprep.subr.mxu0 0.0
    %410 = vmatpush1.msra.mxu0 0.0
    %411 = vmatprep.subr.mxu0 0.0
    %412 = vmatpush1.msra.mxu0 0.0
    %413 = vmatprep.subr.mxu0 0.0
    %414 = vmatpush1.msra.mxu0 0.0
    %415 = vmatprep.subr.mxu0 0.0
    %416 = vmatpush1.msra.mxu0 0.0
    %417 = vmatprep.subr.mxu0 0.0
    %418 = vmatpush1.msra.mxu0 0.0
    %419 = vmatprep.subr.mxu0 0.0
    %420 = vmatpush1.msra.mxu0 0.0
    %421 = vmatprep.subr.mxu0 0.0
    %422 = vmatpush1.msra.mxu0 0.0
    %423 = vmatprep.subr.mxu0 0.0
    %424 = vmatpush1.msra.mxu0 0.0
    %425 = vmatprep.subr.mxu0 0.0
    %426 = vmatpush1.msra.mxu0 0.0
    %427 = vmatprep.subr.mxu0 0.0
    %428 = vmatpush1.msra.mxu0 0.0
    %429 = vmatprep.subr.mxu0 0.0
    %430 = vmatpush1.msra.mxu0 0.0
    %431 = vmatprep.subr.mxu0 0.0
    %432 = vmatpush1.msra.mxu0 0.0
    %433 = vmatprep.subr.mxu0 0.0
    %434 = vmatpush1.msra.mxu0 0.0
    %435 = vmatprep.subr.mxu0 0.0
    %436 = vmatpush1.msra.mxu0 0.0
    %437 = vmatprep.subr.mxu0 0.0
    %438 = vmatpush1.msra.mxu0 0.0
    %439 = vmatprep.mubr.f32.mxu0 0.0
    %v440 = vand.u32 %v80, 4294901760
    %v441 = vsub.f32 %v80, %v440
    %v442 = vand.u32 %v441, 4294901760
    %443 = vmatmul.mubr.f32.gmra.mrb[0].mxu0 %v442
    %v444 = vpop.f32.mrb[0].mxu0
    %v445 = vadd.f32 %v363, %v444
    %v446 = vpop.f32.mrb[0].mxu0
    %v447 = vadd.f32 %v365, %v446
    %448 = vdwg.mxu0
    %v449 = vand.u32 %v71, 4294901760
    %v450 = vsub.f32 %v71, %v449
    %v451 = vand.u32 %v450, 4294901760
    %452 = vmatprep.subr.mxu0 %v451
    %v453 = vand.u32 %v70, 4294901760
    %v454 = vsub.f32 %v70, %v453
    %v455 = vand.u32 %v454, 4294901760
    %456 = vmatpush1.msra.mxu0 %v455
    %v457 = vand.u32 %v73, 4294901760
    %v458 = vsub.f32 %v73, %v457
    %v459 = vand.u32 %v458, 4294901760
    %460 = vmatprep.subr.mxu0 %v459
    %v461 = vand.u32 %v72, 4294901760
    %v462 = vsub.f32 %v72, %v461
    %v463 = vand.u32 %v462, 4294901760
    %464 = vmatpush1.msra.mxu0 %v463
    %v465 = vand.u32 %v75, 4294901760
    %v466 = vsub.f32 %v75, %v465
    %v467 = vand.u32 %v466, 4294901760
    %468 = vmatprep.subr.mxu0 %v467
    %v469 = vand.u32 %v74, 4294901760
    %v470 = vsub.f32 %v74, %v469
    %v471 = vand.u32 %v470, 4294901760
    %472 = vmatpush1.msra.mxu0 %v471
    %v473 = vand.u32 %v77, 4294901760
    %v474 = vsub.f32 %v77, %v473
    %v475 = vand.u32 %v474, 4294901760
    %476 = vmatprep.subr.mxu0 %v475
    %v477 = vand.u32 %v76, 4294901760
    %v478 = vsub.f32 %v76, %v477
    %v479 = vand.u32 %v478, 4294901760
    %480 = vmatpush1.msra.mxu0 %v479
    %481 = vmatprep.subr.mxu0 0.0
    %482 = vmatpush1.msra.mxu0 0.0
    %483 = vmatprep.subr.mxu0 0.0
    %484 = vmatpush1.msra.mxu0 0.0
    %485 = vmatprep.subr.mxu0 0.0
    %486 = vmatpush1.msra.mxu0 0.0
    %487 = vmatprep.subr.mxu0 0.0
    %488 = vmatpush1.msra.mxu0 0.0
    %489 = vmatprep.subr.mxu0 0.0
    %490 = vmatpush1.msra.mxu0 0.0
    %491 = vmatprep.subr.mxu0 0.0
    %492 = vmatpush1.msra.mxu0 0.0
    %493 = vmatprep.subr.mxu0 0.0
    %494 = vmatpush1.msra.mxu0 0.0
    %495 = vmatprep.subr.mxu0 0.0
    %496 = vmatpush1.msra.mxu0 0.0
    %497 = vmatprep.subr.mxu0 0.0
    %498 = vmatpush1.msra.mxu0 0.0
    %499 = vmatprep.subr.mxu0 0.0
    %500 = vmatpush1.msra.mxu0 0.0
    %501 = vmatprep.subr.mxu0 0.0
    %502 = vmatpush1.msra.mxu0 0.0
    %503 = vmatprep.subr.mxu0 0.0
    %504 = vmatpush1.msra.mxu0 0.0
    %505 = vmatprep.subr.mxu0 0.0
    %506 = vmatpush1.msra.mxu0 0.0
    %507 = vmatprep.subr.mxu0 0.0
    %508 = vmatpush1.msra.mxu0 0.0
    %509 = vmatprep.subr.mxu0 0.0
    %510 = vmatpush1.msra.mxu0 0.0
    %511 = vmatprep.subr.mxu0 0.0
    %512 = vmatpush1.msra.mxu0 0.0
    %513 = vmatprep.subr.mxu0 0.0
    %514 = vmatpush1.msra.mxu0 0.0
    %515 = vmatprep.subr.mxu0 0.0
    %516 = vmatpush1.msra.mxu0 0.0
    %517 = vmatprep.subr.mxu0 0.0
    %518 = vmatpush1.msra.mxu0 0.0
    %519 = vmatprep.subr.mxu0 0.0
    %520 = vmatpush1.msra.mxu0 0.0
    %521 = vmatprep.subr.mxu0 0.0
    %522 = vmatpush1.msra.mxu0 0.0
    %523 = vmatprep.subr.mxu0 0.0
    %524 = vmatpush1.msra.mxu0 0.0
    %525 = vmatprep.subr.mxu0 0.0
    %526 = vmatpush1.msra.mxu0 0.0
    %527 = vmatprep.subr.mxu0 0.0
    %528 = vmatpush1.msra.mxu0 0.0
    %529 = vmatprep.subr.mxu0 0.0
    %530 = vmatpush1.msra.mxu0 0.0
    %531 = vmatprep.subr.mxu0 0.0
    %532 = vmatpush1.msra.mxu0 0.0
    %533 = vmatprep.subr.mxu0 0.0
    %534 = vmatpush1.msra.mxu0 0.0
    %535 = vmatprep.subr.mxu0 0.0
    %536 = vmatpush1.msra.mxu0 0.0
    %537 = vmatprep.mubr.f32.mxu0 0.0
    %v538 = vand.u32 %v80, 4294901760
    %539 = vmatmul.mubr.f32.gmra.mrb[0].mxu0 %v538
    %v540 = vpop.f32.mrb[0].mxu0
    %v541 = vadd.f32 %v445, %v540
    %v542 = vpop.f32.mrb[0].mxu0
    %v543 = vadd.f32 %v447, %v542
    %544 = vdwg.mxu0
    %v545 = vand.u32 %v71, 4294901760
    %546 = vmatprep.subr.mxu0 %v545
    %v547 = vand.u32 %v70, 4294901760
    %548 = vmatpush1.msra.mxu0 %v547
    %v549 = vand.u32 %v73, 4294901760
    %550 = vmatprep.subr.mxu0 %v549
    %v551 = vand.u32 %v72, 4294901760
    %552 = vmatpush1.msra.mxu0 %v551
    %v553 = vand.u32 %v75, 4294901760
    %554 = vmatprep.subr.mxu0 %v553
    %v555 = vand.u32 %v74, 4294901760
    %556 = vmatpush1.msra.mxu0 %v555
    %v557 = vand.u32 %v77, 4294901760
    %558 = vmatprep.subr.mxu0 %v557
    %v559 = vand.u32 %v76, 4294901760
    %560 = vmatpush1.msra.mxu0 %v559
    %561 = vmatprep.subr.mxu0 0.0
    %562 = vmatpush1.msra.mxu0 0.0
    %563 = vmatprep.subr.mxu0 0.0
    %564 = vmatpush1.msra.mxu0 0.0
    %565 = vmatprep.subr.mxu0 0.0
    %566 = vmatpush1.msra.mxu0 0.0
    %567 = vmatprep.subr.mxu0 0.0
    %568 = vmatpush1.msra.mxu0 0.0
    %569 = vmatprep.subr.mxu0 0.0
    %570 = vmatpush1.msra.mxu0 0.0
    %571 = vmatprep.subr.mxu0 0.0
    %572 = vmatpush1.msra.mxu0 0.0
    %573 = vmatprep.subr.mxu0 0.0
    %574 = vmatpush1.msra.mxu0 0.0
    %575 = vmatprep.subr.mxu0 0.0
    %576 = vmatpush1.msra.mxu0 0.0
    %577 = vmatprep.subr.mxu0 0.0
    %578 = vmatpush1.msra.mxu0 0.0
    %579 = vmatprep.subr.mxu0 0.0
    %580 = vmatpush1.msra.mxu0 0.0
    %581 = vmatprep.subr.mxu0 0.0
    %582 = vmatpush1.msra.mxu0 0.0
    %583 = vmatprep.subr.mxu0 0.0
    %584 = vmatpush1.msra.mxu0 0.0
    %585 = vmatprep.subr.mxu0 0.0
    %586 = vmatpush1.msra.mxu0 0.0
    %587 = vmatprep.subr.mxu0 0.0
    %588 = vmatpush1.msra.mxu0 0.0
    %589 = vmatprep.subr.mxu0 0.0
    %590 = vmatpush1.msra.mxu0 0.0
    %591 = vmatprep.subr.mxu0 0.0
    %592 = vmatpush1.msra.mxu0 0.0
    %593 = vmatprep.subr.mxu0 0.0
    %594 = vmatpush1.msra.mxu0 0.0
    %595 = vmatprep.subr.mxu0 0.0
    %596 = vmatpush1.msra.mxu0 0.0
    %597 = vmatprep.subr.mxu0 0.0
    %598 = vmatpush1.msra.mxu0 0.0
    %599 = vmatprep.subr.mxu0 0.0
    %600 = vmatpush1.msra.mxu0 0.0
    %601 = vmatprep.subr.mxu0 0.0
    %602 = vmatpush1.msra.mxu0 0.0
    %603 = vmatprep.subr.mxu0 0.0
    %604 = vmatpush1.msra.mxu0 0.0
    %605 = vmatprep.subr.mxu0 0.0
    %606 = vmatpush1.msra.mxu0 0.0
    %607 = vmatprep.subr.mxu0 0.0
    %608 = vmatpush1.msra.mxu0 0.0
    %609 = vmatprep.subr.mxu0 0.0
    %610 = vmatpush1.msra.mxu0 0.0
    %611 = vmatprep.subr.mxu0 0.0
    %612 = vmatpush1.msra.mxu0 0.0
    %613 = vmatprep.subr.mxu0 0.0
    %614 = vmatpush1.msra.mxu0 0.0
    %615 = vmatprep.subr.mxu0 0.0
    %616 = vmatpush1.msra.mxu0 0.0
    %617 = vmatprep.mubr.f32.mxu0 0.0
    %v618 = vand.u32 %v80, 4294901760
    %619 = vmatmul.mubr.f32.gmra.mrb[0].mxu0 %v618
    %v620 = vpop.f32.mrb[0].mxu0
    %v621 = vadd.f32 %v541, %v620
    %v622 = vpop.f32.mrb[0].mxu0
    %v623 = vadd.f32 %v543, %v622
    %624 = vdwg.mxu0
    %v625 = vmul.f32 %v621, 0.0625
    %v626 = vmul.f32 %v623, 0.0625
    %v627 = vld [vmem:[#allocation5] sm:$0xff]
    %v628 = vld [vmem:[#allocation8] sm:$0xff]
    %v629 = vld [vmem:[#allocation8 + $0x8] sm:$0xff]
    %v630 = vld [vmem:[#allocation8 + $0x10] sm:$0xff]
    %v631 = vld [vmem:[#allocation8 + $0x18] sm:$0xff]
    %vm632 = vcmask 130048
    %v634 = vsel %vm632, %v627, 0
    %v636 = vand.u32 %v629, 4294901760
    %637 = vmatprep.subr.mxu0 %v636
    %v638 = vand.u32 %v628, 4294901760
    %639 = vmatpush1.msra.mxu0 %v638
    %v640 = vand.u32 %v631, 4294901760
    %641 = vmatprep.subr.mxu0 %v640
    %v642 = vand.u32 %v630, 4294901760
    %643 = vmatpush1.msra.mxu0 %v642
    %644 = vmatprep.subr.mxu0 0.0
    %645 = vmatpush1.msra.mxu0 0.0
    %646 = vmatprep.subr.mxu0 0.0
    %647 = vmatpush1.msra.mxu0 0.0
    %648 = vmatprep.subr.mxu0 0.0
    %649 = vmatpush1.msra.mxu0 0.0
    %650 = vmatprep.subr.mxu0 0.0
    %651 = vmatpush1.msra.mxu0 0.0
    %652 = vmatprep.subr.mxu0 0.0
    %653 = vmatpush1.msra.mxu0 0.0
    %654 = vmatprep.subr.mxu0 0.0
    %655 = vmatpush1.msra.mxu0 0.0
    %656 = vmatprep.subr.mxu0 0.0
    %657 = vmatpush1.msra.mxu0 0.0
    %658 = vmatprep.subr.mxu0 0.0
    %659 = vmatpush1.msra.mxu0 0.0
    %660 = vmatprep.subr.mxu0 0.0
    %661 = vmatpush1.msra.mxu0 0.0
    %662 = vmatprep.subr.mxu0 0.0
    %663 = vmatpush1.msra.mxu0 0.0
    %664 = vmatprep.subr.mxu0 0.0
    %665 = vmatpush1.msra.mxu0 0.0
    %666 = vmatprep.subr.mxu0 0.0
    %667 = vmatpush1.msra.mxu0 0.0
    %668 = vmatprep.subr.mxu0 0.0
    %669 = vmatpush1.msra.mxu0 0.0
    %670 = vmatprep.subr.mxu0 0.0
    %671 = vmatpush1.msra.mxu0 0.0
    %672 = vmatprep.subr.mxu0 0.0
    %673 = vmatpush1.msra.mxu0 0.0
    %674 = vmatprep.subr.mxu0 0.0
    %675 = vmatpush1.msra.mxu0 0.0
    %676 = vmatprep.subr.mxu0 0.0
    %677 = vmatpush1.msra.mxu0 0.0
    %678 = vmatprep.subr.mxu0 0.0
    %679 = vmatpush1.msra.mxu0 0.0
    %680 = vmatprep.subr.mxu0 0.0
    %681 = vmatpush1.msra.mxu0 0.0
    %682 = vmatprep.subr.mxu0 0.0
    %683 = vmatpush1.msra.mxu0 0.0
    %684 = vmatprep.subr.mxu0 0.0
    %685 = vmatpush1.msra.mxu0 0.0
    %686 = vmatprep.subr.mxu0 0.0
    %687 = vmatpush1.msra.mxu0 0.0
    %688 = vmatprep.subr.mxu0 0.0
    %689 = vmatpush1.msra.mxu0 0.0
    %690 = vmatprep.subr.mxu0 0.0
    %691 = vmatpush1.msra.mxu0 0.0
    %692 = vmatprep.subr.mxu0 0.0
    %693 = vmatpush1.msra.mxu0 0.0
    %694 = vmatprep.subr.mxu0 0.0
    %695 = vmatpush1.msra.mxu0 0.0
    %696 = vmatprep.subr.mxu0 0.0
    %697 = vmatpush1.msra.mxu0 0.0
    %698 = vmatprep.subr.mxu0 0.0
    %699 = vmatpush1.msra.mxu0 0.0
    %700 = vmatprep.subr.mxu0 0.0
    %701 = vmatpush1.msra.mxu0 0.0
    %702 = vmatprep.subr.mxu0 0.0
    %703 = vmatpush1.msra.mxu0 0.0
    %704 = vmatprep.mubr.f32.mxu0 0.0
    %v705 = vand.u32 %v634, 4294901760
    %v706 = vsub.f32 %v634, %v705
    %v707 = vand.u32 %v706, 4294901760
    %v708 = vsub.f32 %v706, %v707
    %v709 = vand.u32 %v708, 4294901760
    %710 = vmatmul.mubr.f32.gmra.mrb[0].mxu0 %v709
    %v711 = vpop.f32.mrb[0].mxu0
    %v712 = vadd.f32 0.0, %v711
    %v713 = vpop.f32.mrb[0].mxu0
    %v714 = vadd.f32 0.0, %v713
    %715 = vdwg.mxu0
    %v716 = vand.u32 %v629, 4294901760
    %v717 = vsub.f32 %v629, %v716
    %v718 = vand.u32 %v717, 4294901760
    %v719 = vsub.f32 %v717, %v718
    %v720 = vand.u32 %v719, 4294901760
    %721 = vmatprep.subr.mxu0 %v720
    %v722 = vand.u32 %v628, 4294901760
    %v723 = vsub.f32 %v628, %v722
    %v724 = vand.u32 %v723, 4294901760
    %v725 = vsub.f32 %v723, %v724
    %v726 = vand.u32 %v725, 4294901760
    %727 = vmatpush1.msra.mxu0 %v726
    %v728 = vand.u32 %v631, 4294901760
    %v729 = vsub.f32 %v631, %v728
    %v730 = vand.u32 %v729, 4294901760
    %v731 = vsub.f32 %v729, %v730
    %v732 = vand.u32 %v731, 4294901760
    %733 = vmatprep.subr.mxu0 %v732
    %v734 = vand.u32 %v630, 4294901760
    %v735 = vsub.f32 %v630, %v734
    %v736 = vand.u32 %v735, 4294901760
    %v737 = vsub.f32 %v735, %v736
    %v738 = vand.u32 %v737, 4294901760
    %739 = vmatpush1.msra.mxu0 %v738
    %740 = vmatprep.subr.mxu0 0.0
    %741 = vmatpush1.msra.mxu0 0.0
    %742 = vmatprep.subr.mxu0 0.0
    %743 = vmatpush1.msra.mxu0 0.0
    %744 = vmatprep.subr.mxu0 0.0
    %745 = vmatpush1.msra.mxu0 0.0
    %746 = vmatprep.subr.mxu0 0.0
    %747 = vmatpush1.msra.mxu0 0.0
    %748 = vmatprep.subr.mxu0 0.0
    %749 = vmatpush1.msra.mxu0 0.0
    %750 = vmatprep.subr.mxu0 0.0
    %751 = vmatpush1.msra.mxu0 0.0
    %752 = vmatprep.subr.mxu0 0.0
    %753 = vmatpush1.msra.mxu0 0.0
    %754 = vmatprep.subr.mxu0 0.0
    %755 = vmatpush1.msra.mxu0 0.0
    %756 = vmatprep.subr.mxu0 0.0
    %757 = vmatpush1.msra.mxu0 0.0
    %758 = vmatprep.subr.mxu0 0.0
    %759 = vmatpush1.msra.mxu0 0.0
    %760 = vmatprep.subr.mxu0 0.0
    %761 = vmatpush1.msra.mxu0 0.0
    %762 = vmatprep.subr.mxu0 0.0
    %763 = vmatpush1.msra.mxu0 0.0
    %764 = vmatprep.subr.mxu0 0.0
    %765 = vmatpush1.msra.mxu0 0.0
    %766 = vmatprep.subr.mxu0 0.0
    %767 = vmatpush1.msra.mxu0 0.0
    %768 = vmatprep.subr.mxu0 0.0
    %769 = vmatpush1.msra.mxu0 0.0
    %770 = vmatprep.subr.mxu0 0.0
    %771 = vmatpush1.msra.mxu0 0.0
    %772 = vmatprep.subr.mxu0 0.0
    %773 = vmatpush1.msra.mxu0 0.0
    %774 = vmatprep.subr.mxu0 0.0
    %775 = vmatpush1.msra.mxu0 0.0
    %776 = vmatprep.subr.mxu0 0.0
    %777 = vmatpush1.msra.mxu0 0.0
    %778 = vmatprep.subr.mxu0 0.0
    %779 = vmatpush1.msra.mxu0 0.0
    %780 = vmatprep.subr.mxu0 0.0
    %781 = vmatpush1.msra.mxu0 0.0
    %782 = vmatprep.subr.mxu0 0.0
    %783 = vmatpush1.msra.mxu0 0.0
    %784 = vmatprep.subr.mxu0 0.0
    %785 = vmatpush1.msra.mxu0 0.0
    %786 = vmatprep.subr.mxu0 0.0
    %787 = vmatpush1.msra.mxu0 0.0
    %788 = vmatprep.subr.mxu0 0.0
    %789 = vmatpush1.msra.mxu0 0.0
    %790 = vmatprep.subr.mxu0 0.0
    %791 = vmatpush1.msra.mxu0 0.0
    %792 = vmatprep.subr.mxu0 0.0
    %793 = vmatpush1.msra.mxu0 0.0
    %794 = vmatprep.subr.mxu0 0.0
    %795 = vmatpush1.msra.mxu0 0.0
    %796 = vmatprep.subr.mxu0 0.0
    %797 = vmatpush1.msra.mxu0 0.0
    %798 = vmatprep.subr.mxu0 0.0
    %799 = vmatpush1.msra.mxu0 0.0
    %800 = vmatprep.mubr.f32.mxu0 0.0
    %v801 = vand.u32 %v634, 4294901760
    %802 = vmatmul.mubr.f32.gmra.mrb[0].mxu0 %v801
    %v803 = vpop.f32.mrb[0].mxu0
    %v804 = vadd.f32 %v712, %v803
    %v805 = vpop.f32.mrb[0].mxu0
    %v806 = vadd.f32 %v714, %v805
    %807 = vdwg.mxu0
    %v808 = vand.u32 %v629, 4294901760
    %v809 = vsub.f32 %v629, %v808
    %810 = vmatprep.subr.mxu0 %v809
    %v811 = vand.u32 %v628, 4294901760
    %v812 = vsub.f32 %v628, %v811
    %813 = vmatpush1.msra.mxu0 %v812
    %v814 = vand.u32 %v631, 4294901760
    %v815 = vsub.f32 %v631, %v814
    %816 = vmatprep.subr.mxu0 %v815
    %v817 = vand.u32 %v630, 4294901760
    %v818 = vsub.f32 %v630, %v817
    %819 = vmatpush1.msra.mxu0 %v818
    %820 = vmatprep.subr.mxu0 0.0
    %821 = vmatpush1.msra.mxu0 0.0
    %822 = vmatprep.subr.mxu0 0.0
    %823 = vmatpush1.msra.mxu0 0.0
    %824 = vmatprep.subr.mxu0 0.0
    %825 = vmatpush1.msra.mxu0 0.0
    %826 = vmatprep.subr.mxu0 0.0
    %827 = vmatpush1.msra.mxu0 0.0
    %828 = vmatprep.subr.mxu0 0.0
    %829 = vmatpush1.msra.mxu0 0.0
    %830 = vmatprep.subr.mxu0 0.0
    %831 = vmatpush1.msra.mxu0 0.0
    %832 = vmatprep.subr.mxu0 0.0
    %833 = vmatpush1.msra.mxu0 0.0
    %834 = vmatprep.subr.mxu0 0.0
    %835 = vmatpush1.msra.mxu0 0.0
    %836 = vmatprep.subr.mxu0 0.0
    %837 = vmatpush1.msra.mxu0 0.0
    %838 = vmatprep.subr.mxu0 0.0
    %839 = vmatpush1.msra.mxu0 0.0
    %840 = vmatprep.subr.mxu0 0.0
    %841 = vmatpush1.msra.mxu0 0.0
    %842 = vmatprep.subr.mxu0 0.0
    %843 = vmatpush1.msra.mxu0 0.0
    %844 = vmatprep.subr.mxu0 0.0
    %845 = vmatpush1.msra.mxu0 0.0
    %846 = vmatprep.subr.mxu0 0.0
    %847 = vmatpush1.msra.mxu0 0.0
    %848 = vmatprep.subr.mxu0 0.0
    %849 = vmatpush1.msra.mxu0 0.0
    %850 = vmatprep.subr.mxu0 0.0
    %851 = vmatpush1.msra.mxu0 0.0
    %852 = vmatprep.subr.mxu0 0.0
    %853 = vmatpush1.msra.mxu0 0.0
    %854 = vmatprep.subr.mxu0 0.0
    %855 = vmatpush1.msra.mxu0 0.0
    %856 = vmatprep.subr.mxu0 0.0
    %857 = vmatpush1.msra.mxu0 0.0
    %858 = vmatprep.subr.mxu0 0.0
    %859 = vmatpush1.msra.mxu0 0.0
    %860 = vmatprep.subr.mxu0 0.0
    %861 = vmatpush1.msra.mxu0 0.0
    %862 = vmatprep.subr.mxu0 0.0
    %863 = vmatpush1.msra.mxu0 0.0
    %864 = vmatprep.subr.mxu0 0.0
    %865 = vmatpush1.msra.mxu0 0.0
    %866 = vmatprep.subr.mxu0 0.0
    %867 = vmatpush1.msra.mxu0 0.0
    %868 = vmatprep.subr.mxu0 0.0
    %869 = vmatpush1.msra.mxu0 0.0
    %870 = vmatprep.subr.mxu0 0.0
    %871 = vmatpush1.msra.mxu0 0.0
    %872 = vmatprep.subr.mxu0 0.0
    %873 = vmatpush1.msra.mxu0 0.0
    %874 = vmatprep.subr.mxu0 0.0
    %875 = vmatpush1.msra.mxu0 0.0
    %876 = vmatprep.subr.mxu0 0.0
    %877 = vmatpush1.msra.mxu0 0.0
    %878 = vmatprep.subr.mxu0 0.0
    %879 = vmatpush1.msra.mxu0 0.0
    %880 = vmatprep.mubr.f32.mxu0 0.0
    %v881 = vand.u32 %v634, 4294901760
    %v882 = vsub.f32 %v634, %v881
    %883 = vmatmul.mubr.f32.gmra.mrb[0].mxu0 %v882
    %v884 = vpop.f32.mrb[0].mxu0
    %v885 = vadd.f32 %v804, %v884
    %v886 = vpop.f32.mrb[0].mxu0
    %v887 = vadd.f32 %v806, %v886
    %888 = vdwg.mxu0
    %v889 = vand.u32 %v629, 4294901760
    %890 = vmatprep.subr.mxu0 %v889
    %v891 = vand.u32 %v628, 4294901760
    %892 = vmatpush1.msra.mxu0 %v891
    %v893 = vand.u32 %v631, 4294901760
    %894 = vmatprep.subr.mxu0 %v893
    %v895 = vand.u32 %v630, 4294901760
    %896 = vmatpush1.msra.mxu0 %v895
    %897 = vmatprep.subr.mxu0 0.0
    %898 = vmatpush1.msra.mxu0 0.0
    %899 = vmatprep.subr.mxu0 0.0
    %900 = vmatpush1.msra.mxu0 0.0
    %901 = vmatprep.subr.mxu0 0.0
    %902 = vmatpush1.msra.mxu0 0.0
    %903 = vmatprep.subr.mxu0 0.0
    %904 = vmatpush1.msra.mxu0 0.0
    %905 = vmatprep.subr.mxu0 0.0
    %906 = vmatpush1.msra.mxu0 0.0
    %907 = vmatprep.subr.mxu0 0.0
    %908 = vmatpush1.msra.mxu0 0.0
    %909 = vmatprep.subr.mxu0 0.0
    %910 = vmatpush1.msra.mxu0 0.0
    %911 = vmatprep.subr.mxu0 0.0
    %912 = vmatpush1.msra.mxu0 0.0
    %913 = vmatprep.subr.mxu0 0.0
    %914 = vmatpush1.msra.mxu0 0.0
    %915 = vmatprep.subr.mxu0 0.0
    %916 = vmatpush1.msra.mxu0 0.0
    %917 = vmatprep.subr.mxu0 0.0
    %918 = vmatpush1.msra.mxu0 0.0
    %919 = vmatprep.subr.mxu0 0.0
    %920 = vmatpush1.msra.mxu0 0.0
    %921 = vmatprep.subr.mxu0 0.0
    %922 = vmatpush1.msra.mxu0 0.0
    %923 = vmatprep.subr.mxu0 0.0
    %924 = vmatpush1.msra.mxu0 0.0
    %925 = vmatprep.subr.mxu0 0.0
    %926 = vmatpush1.msra.mxu0 0.0
    %927 = vmatprep.subr.mxu0 0.0
    %928 = vmatpush1.msra.mxu0 0.0
    %929 = vmatprep.subr.mxu0 0.0
    %930 = vmatpush1.msra.mxu0 0.0
    %931 = vmatprep.subr.mxu0 0.0
    %932 = vmatpush1.msra.mxu0 0.0
    %933 = vmatprep.subr.mxu0 0.0
    %934 = vmatpush1.msra.mxu0 0.0
    %935 = vmatprep.subr.mxu0 0.0
    %936 = vmatpush1.msra.mxu0 0.0
    %937 = vmatprep.subr.mxu0 0.0
    %938 = vmatpush1.msra.mxu0 0.0
    %939 = vmatprep.subr.mxu0 0.0
    %940 = vmatpush1.msra.mxu0 0.0
    %941 = vmatprep.subr.mxu0 0.0
    %942 = vmatpush1.msra.mxu0 0.0
    %943 = vmatprep.subr.mxu0 0.0
    %944 = vmatpush1.msra.mxu0 0.0
    %945 = vmatprep.subr.mxu0 0.0
    %946 = vmatpush1.msra.mxu0 0.0
    %947 = vmatprep.subr.mxu0 0.0
    %948 = vmatpush1.msra.mxu0 0.0
    %949 = vmatprep.subr.mxu0 0.0
    %950 = vmatpush1.msra.mxu0 0.0
    %951 = vmatprep.subr.mxu0 0.0
    %952 = vmatpush1.msra.mxu0 0.0
    %953 = vmatprep.subr.mxu0 0.0
    %954 = vmatpush1.msra.mxu0 0.0
    %955 = vmatprep.subr.mxu0 0.0
    %956 = vmatpush1.msra.mxu0 0.0
    %957 = vmatprep.mubr.f32.mxu0 0.0
    %v958 = vand.u32 %v634, 4294901760
    %v959 = vsub.f32 %v634, %v958
    %v960 = vand.u32 %v959, 4294901760
    %961 = vmatmul.mubr.f32.gmra.mrb[0].mxu0 %v960
    %v962 = vpop.f32.mrb[0].mxu0
    %v963 = vadd.f32 %v885, %v962
    %v964 = vpop.f32.mrb[0].mxu0
    %v965 = vadd.f32 %v887, %v964
    %966 = vdwg.mxu0
    %v967 = vand.u32 %v629, 4294901760
    %v968 = vsub.f32 %v629, %v967
    %v969 = vand.u32 %v968, 4294901760
    %970 = vmatprep.subr.mxu0 %v969
    %v971 = vand.u32 %v628, 4294901760
    %v972 = vsub.f32 %v628, %v971
    %v973 = vand.u32 %v972, 4294901760
    %974 = vmatpush1.msra.mxu0 %v973
    %v975 = vand.u32 %v631, 4294901760
    %v976 = vsub.f32 %v631, %v975
    %v977 = vand.u32 %v976, 4294901760
    %978 = vmatprep.subr.mxu0 %v977
    %v979 = vand.u32 %v630, 4294901760
    %v980 = vsub.f32 %v630, %v979
    %v981 = vand.u32 %v980, 4294901760
    %982 = vmatpush1.msra.mxu0 %v981
    %983 = vmatprep.subr.mxu0 0.0
    %984 = vmatpush1.msra.mxu0 0.0
    %985 = vmatprep.subr.mxu0 0.0
    %986 = vmatpush1.msra.mxu0 0.0
    %987 = vmatprep.subr.mxu0 0.0
    %988 = vmatpush1.msra.mxu0 0.0
    %989 = vmatprep.subr.mxu0 0.0
    %990 = vmatpush1.msra.mxu0 0.0
    %991 = vmatprep.subr.mxu0 0.0
    %992 = vmatpush1.msra.mxu0 0.0
    %993 = vmatprep.subr.mxu0 0.0
    %994 = vmatpush1.msra.mxu0 0.0
    %995 = vmatprep.subr.mxu0 0.0
    %996 = vmatpush1.msra.mxu0 0.0
    %997 = vmatprep.subr.mxu0 0.0
    %998 = vmatpush1.msra.mxu0 0.0
    %999 = vmatprep.subr.mxu0 0.0
    %1000 = vmatpush1.msra.mxu0 0.0
    %1001 = vmatprep.subr.mxu0 0.0
    %1002 = vmatpush1.msra.mxu0 0.0
    %1003 = vmatprep.subr.mxu0 0.0
    %1004 = vmatpush1.msra.mxu0 0.0
    %1005 = vmatprep.subr.mxu0 0.0
    %1006 = vmatpush1.msra.mxu0 0.0
    %1007 = vmatprep.subr.mxu0 0.0
    %1008 = vmatpush1.msra.mxu0 0.0
    %1009 = vmatprep.subr.mxu0 0.0
    %1010 = vmatpush1.msra.mxu0 0.0
    %1011 = vmatprep.subr.mxu0 0.0
    %1012 = vmatpush1.msra.mxu0 0.0
    %1013 = vmatprep.subr.mxu0 0.0
    %1014 = vmatpush1.msra.mxu0 0.0
    %1015 = vmatprep.subr.mxu0 0.0
    %1016 = vmatpush1.msra.mxu0 0.0
    %1017 = vmatprep.subr.mxu0 0.0
    %1018 = vmatpush1.msra.mxu0 0.0
    %1019 = vmatprep.subr.mxu0 0.0
    %1020 = vmatpush1.msra.mxu0 0.0
    %1021 = vmatprep.subr.mxu0 0.0
    %1022 = vmatpush1.msra.mxu0 0.0
    %1023 = vmatprep.subr.mxu0 0.0
    %1024 = vmatpush1.msra.mxu0 0.0
    %1025 = vmatprep.subr.mxu0 0.0
    %1026 = vmatpush1.msra.mxu0 0.0
    %1027 = vmatprep.subr.mxu0 0.0
    %1028 = vmatpush1.msra.mxu0 0.0
    %1029 = vmatprep.subr.mxu0 0.0
    %1030 = vmatpush1.msra.mxu0 0.0
    %1031 = vmatprep.subr.mxu0 0.0
    %1032 = vmatpush1.msra.mxu0 0.0
    %1033 = vmatprep.subr.mxu0 0.0
    %1034 = vmatpush1.msra.mxu0 0.0
    %1035 = vmatprep.subr.mxu0 0.0
    %1036 = vmatpush1.msra.mxu0 0.0
    %1037 = vmatprep.subr.mxu0 0.0
    %1038 = vmatpush1.msra.mxu0 0.0
    %1039 = vmatprep.subr.mxu0 0.0
    %1040 = vmatpush1.msra.mxu0 0.0
    %1041 = vmatprep.subr.mxu0 0.0
    %1042 = vmatpush1.msra.mxu0 0.0
    %1043 = vmatprep.mubr.f32.mxu0 0.0
    %v1044 = vand.u32 %v634, 4294901760
    %1045 = vmatmul.mubr.f32.gmra.mrb[0].mxu0 %v1044
    %v1046 = vpop.f32.mrb[0].mxu0
    %v1047 = vadd.f32 %v963, %v1046
    %v1048 = vpop.f32.mrb[0].mxu0
    %v1049 = vadd.f32 %v965, %v1048
    %1050 = vdwg.mxu0
    %v1051 = vand.u32 %v629, 4294901760
    %1052 = vmatprep.subr.mxu0 %v1051
    %v1053 = vand.u32 %v628, 4294901760
    %1054 = vmatpush1.msra.mxu0 %v1053
    %v1055 = vand.u32 %v631, 4294901760
    %1056 = vmatprep.subr.mxu0 %v1055
    %v1057 = vand.u32 %v630, 4294901760
    %1058 = vmatpush1.msra.mxu0 %v1057
    %1059 = vmatprep.subr.mxu0 0.0
    %1060 = vmatpush1.msra.mxu0 0.0
    %1061 = vmatprep.subr.mxu0 0.0
    %1062 = vmatpush1.msra.mxu0 0.0
    %1063 = vmatprep.subr.mxu0 0.0
    %1064 = vmatpush1.msra.mxu0 0.0
    %1065 = vmatprep.subr.mxu0 0.0
    %1066 = vmatpush1.msra.mxu0 0.0
    %1067 = vmatprep.subr.mxu0 0.0
    %1068 = vmatpush1.msra.mxu0 0.0
    %1069 = vmatprep.subr.mxu0 0.0
    %1070 = vmatpush1.msra.mxu0 0.0
    %1071 = vmatprep.subr.mxu0 0.0
    %1072 = vmatpush1.msra.mxu0 0.0
    %1073 = vmatprep.subr.mxu0 0.0
    %1074 = vmatpush1.msra.mxu0 0.0
    %1075 = vmatprep.subr.mxu0 0.0
    %1076 = vmatpush1.msra.mxu0 0.0
    %1077 = vmatprep.subr.mxu0 0.0
    %1078 = vmatpush1.msra.mxu0 0.0
    %1079 = vmatprep.subr.mxu0 0.0
    %1080 = vmatpush1.msra.mxu0 0.0
    %1081 = vmatprep.subr.mxu0 0.0
    %1082 = vmatpush1.msra.mxu0 0.0
    %1083 = vmatprep.subr.mxu0 0.0
    %1084 = vmatpush1.msra.mxu0 0.0
    %1085 = vmatprep.subr.mxu0 0.0
    %1086 = vmatpush1.msra.mxu0 0.0
    %1087 = vmatprep.subr.mxu0 0.0
    %1088 = vmatpush1.msra.mxu0 0.0
    %1089 = vmatprep.subr.mxu0 0.0
    %1090 = vmatpush1.msra.mxu0 0.0
    %1091 = vmatprep.subr.mxu0 0.0
    %1092 = vmatpush1.msra.mxu0 0.0
    %1093 = vmatprep.subr.mxu0 0.0
    %1094 = vmatpush1.msra.mxu0 0.0
    %1095 = vmatprep.subr.mxu0 0.0
    %1096 = vmatpush1.msra.mxu0 0.0
    %1097 = vmatprep.subr.mxu0 0.0
    %1098 = vmatpush1.msra.mxu0 0.0
    %1099 = vmatprep.subr.mxu0 0.0
    %1100 = vmatpush1.msra.mxu0 0.0
    %1101 = vmatprep.subr.mxu0 0.0
    %1102 = vmatpush1.msra.mxu0 0.0
    %1103 = vmatprep.subr.mxu0 0.0
    %1104 = vmatpush1.msra.mxu0 0.0
    %1105 = vmatprep.subr.mxu0 0.0
    %1106 = vmatpush1.msra.mxu0 0.0
    %1107 = vmatprep.subr.mxu0 0.0
    %1108 = vmatpush1.msra.mxu0 0.0
    %1109 = vmatprep.subr.mxu0 0.0
    %1110 = vmatpush1.msra.mxu0 0.0
    %1111 = vmatprep.subr.mxu0 0.0
    %1112 = vmatpush1.msra.mxu0 0.0
    %1113 = vmatprep.subr.mxu0 0.0
    %1114 = vmatpush1.msra.mxu0 0.0
    %1115 = vmatprep.subr.mxu0 0.0
    %1116 = vmatpush1.msra.mxu0 0.0
    %1117 = vmatprep.subr.mxu0 0.0
    %1118 = vmatpush1.msra.mxu0 0.0
    %1119 = vmatprep.mubr.f32.mxu0 0.0
    %v1120 = vand.u32 %v634, 4294901760
    %1121 = vmatmul.mubr.f32.gmra.mrb[0].mxu0 %v1120
    %v1122 = vpop.f32.mrb[0].mxu0
    %v1123 = vadd.f32 %v1047, %v1122
    %v1124 = vpop.f32.mrb[0].mxu0
    %v1125 = vadd.f32 %v1049, %v1124
    %1126 = vdwg.mxu0
    %v1127 = vmul.f32 %v625, %v1123
    %v1128 = vmul.f32 %v626, %v1125
    %1129 = vst [vmem:[#allocation10] sm:$0xff] %v1127
    %1130 = vst [vmem:[#allocation10 + $0x8] sm:$0xff] %v1128
    // Predicated region
    $region34: #{tpu_custom_call.1} parent=1 // pred_check
      _
    $region35: #{tpu_custom_call.1} parent=1 // pred_check_branch
      %1132 = sbr.rel (0) target = $region37
    $region36: #{tpu_custom_call.1} parent=1 // pred_region
      %s1134 = ssub.s32 256, 256
      %1135 = vsyncadd [#allocation4], %s1134
      %s1137 = sshll.u32 [#allocation10], 4
      %s1138 = int_to_ptr.vmem [resolvable:$true] %s1137
      %1140 = dma.vmem_to_hbm [thread:$0]  %s1138, 256, %s4, [#allocation4]
    $region37: #{tpu_custom_call.1} parent=1 // pred_fallthru
      _
    // Predicated region
    $region38: #{tpu_custom_call.1} parent=1 // pred_check
      _
    $region39: #{tpu_custom_call.1} parent=1 // pred_check_branch
      %1142 = sbr.rel (0) target = $region41
    $region40: #{tpu_custom_call.1} parent=1 // pred_region
      %1143 = dma.done [#allocation4], 256
    $region41: #{tpu_custom_call.1} parent=1 // pred_fallthru
      _
    %1144 = vsyncpa [#allocation3], 1
    %1145 = vsyncpa [#allocation6], 1
    %1146 = vsyncpa [#allocation9], 1
    %1147 = vsyncpa [#allocation4], 1

</llo_original>
